<compile_context>
chip_gen: v7x
topology: tpu7x:2x2x1
jax: 0.10.0
libtpu: 0.0.40
codegen_flags: <defaults>
</compile_context>

<pallas_src>
import functools

import jax
import jax.numpy as jnp
from jax.experimental import pallas as pl
from jax.experimental.pallas import tpu as pltpu

_LANES = 128
_ROW_ALIGN = 16   # sublane packing granularity for both f32 (8) and bf16 (16)
_STRIP = 512      # rows per in-kernel strip (512*128*4 B = 256 KiB f32 temporaries)


def _round_up(x, m):
    return (x + m - 1) // m * m


def _kld_partial_kernel(mu_ref, lv_ref, out_ref, *, rows, strip, need_mask):
    """Sum of (logvar - mu^2 - exp(logvar)) over one (tb, 128) tile, folded to
    an (8, 128) f32 partial.  The per-element "+1" is re-added in the wrapper;
    masked / zero-padded elements contribute exactly -1 here (cancelled there).
    """
    tb = mu_ref.shape[0]
    nstrips = tb // strip
    base = pl.program_id(0) * tb

    def strip_sum(s, acc):
        r0 = pl.multiple_of(s * strip, strip)
        mu = mu_ref[pl.ds(r0, strip), :].astype(jnp.float32)
        lv = lv_ref[pl.ds(r0, strip), :].astype(jnp.float32)
        if need_mask:
            row = base + r0 + jax.lax.broadcasted_iota(jnp.int32, (strip, _LANES), 0)
            valid = row < rows
            mu = jnp.where(valid, mu, 0.0)   # mask BEFORE exp: OOB garbage
            lv = jnp.where(valid, lv, 0.0)   # cannot propagate NaN/Inf
        term = lv - mu * mu - jnp.exp(lv)    # exp rides the free EUP slot
        # (strip, 128) -> (strip//8, 8, 128): layout-free fold, pure VPU adds;
        # the single cross-lane reduce happens later, in XLA, on the partials.
        return acc + jnp.sum(term.reshape(strip // 8, 8, _LANES), axis=0)

    out_ref[...] = jax.lax.fori_loop(
        0, nstrips, strip_sum, jnp.zeros((8, _LANES), jnp.float32), unroll=True)


def _default_block_rows(bytes_per_row):
    """Target ~4 MiB of input per grid step on v6e/v7x, ~2 MiB on v5e/v5p."""
    kind = ""
    try:
        kind = jax.devices()[0].device_kind.lower()
    except Exception:  # pragma: no cover - defensive only
        pass
    target = (2 << 20) if "v5" in kind else (4 << 20)
    return max(_STRIP, _round_up(target // bytes_per_row, _STRIP))


def _choose_tile(rows, block_rows):
    """Tile rows: a multiple of _STRIP (large tiles) or _ROW_ALIGN (small ones),
    capped at ceil(rows/2) so the parallel grid has >= 2 steps when possible."""
    want = max(1, min(block_rows, pl.cdiv(rows, 2)))
    if want >= _STRIP:
        tb = _round_up(want, _STRIP)
    else:
        tb = _round_up(want, _ROW_ALIGN)
    return min(tb, rows)


def vae_loss_pallas(bce_loss, mu, logvar, *, block_rows=None):
    """VAELoss.forward(bce_loss, mu, logvar) with the KLD sum done in Pallas."""
    assert mu.shape == logvar.shape, (mu.shape, logvar.shape)
    n = int(mu.size)
    assert n > 0

    mu_item = jnp.dtype(mu.dtype).itemsize
    lv_item = jnp.dtype(logvar.dtype).itemsize
    if block_rows is None:
        block_rows = _default_block_rows(_LANES * (mu_item + lv_item))

    # Lane-dense layout.  Pad only when unavoidable (ragged n, or tiny input
    # that would not fill a minimum-aligned tile); the pad is zeros and the
    # target is just the next _ROW_ALIGN row boundary.
    chunk = _LANES * _ROW_ALIGN
    if n % _LANES == 0 and n >= chunk:
        rows, pad = n // _LANES, 0
    else:
        padded = _round_up(n, chunk)
        rows, pad = padded // _LANES, padded - n

    def to_2d(x):
        flat = x.reshape(-1)
        if pad:
            flat = jnp.pad(flat, (0, pad))   # zero pad: cancelled exactly below
        return flat.reshape(rows, _LANES)

    mu2d, lv2d = to_2d(mu), to_2d(logvar)

    tb = _choose_tile(rows, block_rows)
    grid = pl.cdiv(rows, tb)
    strip = _STRIP if tb % _STRIP == 0 else tb
    need_mask = (rows % tb) != 0            # only a ragged tail block has OOB rows

    kernel = functools.partial(
        _kld_partial_kernel, rows=rows, strip=strip, need_mask=need_mask)

    def in_spec():
        if grid >= 3:                       # deeper buffering only pays with enough steps
            return pl.BlockSpec((tb, _LANES), lambda i: (i, 0),
                                pipeline_mode=pl.Buffered(3))
        return pl.BlockSpec((tb, _LANES), lambda i: (i, 0))

    cost = pl.CostEstimate(
        flops=5 * grid * tb * _LANES,
        transcendentals=grid * tb * _LANES,
        bytes_accessed=rows * _LANES * (mu_item + lv_item) + grid * 8 * _LANES * 4,
    )

    partials = pl.pallas_call(
        kernel,
        out_shape=jax.ShapeDtypeStruct((grid * 8, _LANES), jnp.float32),
        grid=(grid,),
        in_specs=[in_spec(), in_spec()],
        out_specs=pl.BlockSpec((8, _LANES), lambda i: (i, 0)),
        compiler_params=pltpu.CompilerParams(
            dimension_semantics=("parallel",),   # independent blocks -> v7x megacore
        ),
        cost_estimate=cost,
    )(mu2d, lv2d)

    # Every computed element carries an implicit "+1": real elements by the KLD
    # formula; masked / zero-padded ones because they contribute exactly -1.
    total = grid * tb * _LANES
    kld = -0.5 * (jnp.sum(partials, dtype=jnp.float32) + jnp.float32(total))
    return jnp.asarray(bce_loss, jnp.float32) + kld


def vae_loss_ref(bce_loss, mu, logvar):
    # Pure-JAX reference (also the preferred path for tiny latents).
    mu32 = mu.astype(jnp.float32)
    lv32 = logvar.astype(jnp.float32)
    kld = -0.5 * jnp.sum(1.0 + lv32 - mu32 * mu32 - jnp.exp(lv32))
    return jnp.asarray(bce_loss, jnp.float32) + kld


def vae_loss(bce_loss, mu, logvar, *, min_pallas_elems=1 << 15, block_rows=None):
    """Dispatcher: fused XLA for tiny inputs (launch overhead dominates), Pallas otherwise."""
    if mu.size < min_pallas_elems:
        return vae_loss_ref(bce_loss, mu, logvar)
    return vae_loss_pallas(bce_loss, mu, logvar, block_rows=block_rows)


if __name__ == "__main__":
    key = jax.random.PRNGKey(0)
    k1, k2, k3, k4, k5, k6, k7 = jax.random.split(key, 7)

    # 1) Shapes implied by the module: small batch, small latent dim (f32).
    B, Z = 2, 32
    mu = jax.random.normal(k1, (B, Z), dtype=jnp.float32)
    logvar = jax.random.normal(k2, (B, Z), dtype=jnp.float32) * 0.1
    bce = jnp.abs(jax.random.normal(k3, (), dtype=jnp.float32)) * 10.0
    out = jax.block_until_ready(vae_loss_pallas(bce, mu, logvar))
    ref = vae_loss_ref(bce, mu, logvar)
    assert jnp.allclose(out, ref, rtol=1e-4, atol=5e-3), (out, ref)

    # 2) bf16 mu + f32 logvar (no silent down-cast), multi-block parallel grid,
    #    no pad copy (n % 2048 == 0), Buffered(3) path (grid = 4).
    B2, Z2 = 64, 512
    mu2 = (jax.random.normal(k4, (B2, Z2)) * 0.5).astype(jnp.bfloat16)
    lv2 = jax.random.normal(k5, (B2, Z2), dtype=jnp.float32) * 0.1
    out2 = jax.block_until_ready(vae_loss_pallas(bce, mu2, lv2, block_rows=64))
    ref2 = vae_loss_ref(bce, mu2, lv2)
    assert jnp.allclose(out2, ref2, rtol=1e-2, atol=1e-2), (out2, ref2)

    # 3) Ragged size (n % 128 != 0): minimal zero pad + in-kernel tail masking,
    #    grid = 3 with a partially-valid last block.
    B3, Z3 = 37, 257
    mu3 = jax.random.normal(k6, (B3, Z3), dtype=jnp.float32) * 0.7
    lv3 = jax.random.normal(k7, (B3, Z3), dtype=jnp.float32) * 0.2
    out3 = jax.block_until_ready(vae_loss_pallas(bce, mu3, lv3, block_rows=32))
    ref3 = vae_loss_ref(bce, mu3, lv3)
    assert jnp.allclose(out3, ref3, rtol=1e-4, atol=1e-2), (out3, ref3)

    print("KERNEL_OK")
</pallas_src>

<mosaic_0001>
module attributes {stable_mosaic.version = 11 : i64} {
  func.func @_kld_partial_kernel(%arg0: i32, %arg1: memref<16x128xf32, #tpu.memory_space<vmem>>, %arg2: memref<16x128xf32, #tpu.memory_space<vmem>>, %arg3: memref<8x128xf32, #tpu.memory_space<vmem>>) attributes {dimension_semantics = [#tpu.dimension_semantics<parallel>], iteration_bounds = array<i64: 1>, scalar_prefetch = 0 : i64, scratch_operands = 0 : i64, tpu.core_type = #tpu.core_type<tc>, window_params = [{transform_indices = @transform_0, window_bounds = array<i64: 16, 128>}, {transform_indices = @transform_1, window_bounds = array<i64: 16, 128>}, {transform_indices = @transform_2, window_bounds = array<i64: 8, 128>}]} {
    %cst = arith.constant 0.000000e+00 : f32
    %0 = vector.broadcast %cst : f32 to vector<8x128xf32>
    %c0_i32 = arith.constant 0 : i32
    %c16_i32 = arith.constant 16 : i32
    %1 = arith.muli %c0_i32, %c16_i32 : i32
    %2 = tpu.assume_multiple %1, 16 : i32
    %3 = arith.index_cast %2 : i32 to index
    %c0 = arith.constant 0 : index
    %4 = vector.load %arg1[%3, %c0] : memref<16x128xf32, #tpu.memory_space<vmem>>, vector<16x128xf32>
    %5 = arith.index_cast %2 : i32 to index
    %c0_0 = arith.constant 0 : index
    %6 = vector.load %arg2[%5, %c0_0] : memref<16x128xf32, #tpu.memory_space<vmem>>, vector<16x128xf32>
    %7 = arith.mulf %4, %4 : vector<16x128xf32>
    %8 = arith.subf %6, %7 : vector<16x128xf32>
    %9 = math.exp %6 : vector<16x128xf32>
    %10 = arith.subf %8, %9 : vector<16x128xf32>
    %11 = vector.shape_cast %10 : vector<16x128xf32> to vector<2x8x128xf32>
    %cst_1 = arith.constant dense<0.000000e+00> : vector<8x128xf32>
    %12 = vector.multi_reduction <add>, %11, %cst_1 [0] : vector<2x8x128xf32> to vector<8x128xf32>
    %13 = arith.addf %0, %12 : vector<8x128xf32>
    %c1_i32 = arith.constant 1 : i32
    %c0_2 = arith.constant 0 : index
    %c0_3 = arith.constant 0 : index
    %14 = vector.load %arg3[%c0_2, %c0_3] : memref<8x128xf32, #tpu.memory_space<vmem>>, vector<8x128xf32>
    tpu.vector_store %arg3[%c0_2, %c0_3], %13 {strides = array<i32>} : memref<8x128xf32, #tpu.memory_space<vmem>>, vector<8x128xf32>,
    return
  }
  func.func @transform_0(%arg0: i32) -> (i32, i32) {
    %c0_i32 = arith.constant 0 : i32
    %c0_i32_0 = arith.constant 0 : i32
    return %arg0, %c0_i32 : i32, i32
  }
  func.func @transform_1(%arg0: i32) -> (i32, i32) {
    %c0_i32 = arith.constant 0 : i32
    %c0_i32_0 = arith.constant 0 : i32
    return %arg0, %c0_i32 : i32, i32
  }
  func.func @transform_2(%arg0: i32) -> (i32, i32) {
    %c0_i32 = arith.constant 0 : i32
    %c0_i32_0 = arith.constant 0 : i32
    return %arg0, %c0_i32 : i32, i32
  }
}

</mosaic_0001>

<llo_original>
// kernel: tpu_custom_call.1
$region0: #{tpu_custom_call.1}
  #allocation0 [shape = 'u32[]', space=smem, size = 0x4, offset = 0x4, fixed_abs, tag = 'smem constant byte address 0x4 - core index']
  #allocation1 [shape = 'u32[144,128]{1,0:T(1,128)}', space=vmem, size = 0x12000, scoped, tag = 'internal scratch']
  %s0 = inlined_call_operand.hbm [shape: f32[16,128], index: 0, kind: input, shape index: {}]
  %s1 = inlined_call_operand.hbm [shape: f32[16,128], index: 1, kind: input, shape index: {}]
  %s2 = inlined_call_operand.hbm [shape: f32[8,128], index: 2, kind: output, shape index: {}]
  %s3 = sld [smem:[#allocation0]]
  $region26: #{tpu_custom_call.1} parent=0
    _
  %s5 = ssub.s32 1, %s3
  %s6 = scalar_select 0, %s5, %s3
  $region1: #{tpu_custom_call.1} parent=0
    #allocation2 [shape = 'u8[8192]{0}', space=vmem, size = 0x2000, scoped, tag = 'input window, operand 0, single buffered']
    #allocation3 [shape = 's32[1]{0}', space=sflag, size = 0x4, scoped, tag = 'scoped memory for tpu_custom_call.1']
    #allocation4 [shape = 's32[1]{0}', space=sflag, size = 0x4, scoped, tag = 'scoped memory for tpu_custom_call.1']
    #allocation5 [shape = 'u8[8192]{0}', space=vmem, size = 0x2000, scoped, tag = 'input window, operand 1, single buffered']
    #allocation6 [shape = 's32[1]{0}', space=sflag, size = 0x4, scoped, tag = 'scoped memory for tpu_custom_call.1']
    #allocation7 [shape = 'u8[4096]{0}', space=vmem, size = 0x1000, scoped, tag = 'output window, operand 0, single buffered']
    %7 = vsyncpa [#allocation3], 0
    %8 = vsyncpa [#allocation6], 0
    %9 = vsyncpa [#allocation4], 0
    // Predicated region
    $region2: #{tpu_custom_call.1} parent=1 // pred_check
      _
    $region3: #{tpu_custom_call.1} parent=1 // pred_check_branch
      %11 = sbr.rel (0) target = $region5
    $region4: #{tpu_custom_call.1} parent=1 // pred_region
      %s13 = ssub.s32 256, 256
      %14 = vsyncadd [#allocation3], %s13
      %s15 = sshll.u32 [#allocation2], 4
      %s16 = int_to_ptr.vmem [resolvable:$true] %s15
      %21 = dma.hbm_to_vmem [thread:$0]  %s0, 256, %s16, [#allocation3], 128, 128, 8
    $region5: #{tpu_custom_call.1} parent=1 // pred_fallthru
      _
    // Predicated region
    $region6: #{tpu_custom_call.1} parent=1 // pred_check
      _
    $region7: #{tpu_custom_call.1} parent=1 // pred_check_branch
      %23 = sbr.rel (0) target = $region9
    $region8: #{tpu_custom_call.1} parent=1 // pred_region
      %s25 = ssub.s32 256, 256
      %26 = vsyncadd [#allocation6], %s25
      %s27 = sshll.u32 [#allocation5], 4
      %s28 = int_to_ptr.vmem [resolvable:$true] %s27
      %33 = dma.hbm_to_vmem [thread:$0]  %s1, 256, %s28, [#allocation6], 128, 128, 8
    $region9: #{tpu_custom_call.1} parent=1 // pred_fallthru
      _
    // Predicated region
    $region10: #{tpu_custom_call.1} parent=1 // pred_check
      _
    $region11: #{tpu_custom_call.1} parent=1 // pred_check_branch
      %35 = sbr.rel (0) target = $region13
    $region12: #{tpu_custom_call.1} parent=1 // pred_region
      %36 = dma.done [#allocation3], 256
    $region13: #{tpu_custom_call.1} parent=1 // pred_fallthru
      _
    // Predicated region
    $region14: #{tpu_custom_call.1} parent=1 // pred_check
      _
    $region15: #{tpu_custom_call.1} parent=1 // pred_check_branch
      %38 = sbr.rel (0) target = $region17
    $region16: #{tpu_custom_call.1} parent=1 // pred_region
      %39 = dma.done [#allocation6], 256
    $region17: #{tpu_custom_call.1} parent=1 // pred_fallthru
      _
    %v40 = vld [vmem:[#allocation2] sm:$0xff]
    %v41 = vld [vmem:[#allocation2 + $0x8] sm:$0xff]
    %v42 = vld [vmem:[#allocation5] sm:$0xff]
    %v43 = vld [vmem:[#allocation5 + $0x8] sm:$0xff]
    %v44 = vmul.f32 %v40, %v40
    %v45 = vmul.f32 %v41, %v41
    %v46 = vsub.f32 %v42, %v44
    %v47 = vsub.f32 %v43, %v45
    %v48 = vmul.f32 %v42, 1.442695
    %v49 = vpow.pop %v48
    %v50 = vmul.f32 %v43, 1.442695
    %v51 = vpow.pop %v50
    %v52 = vsub.f32 %v46, %v49
    %v53 = vsub.f32 %v47, %v51
    %v54 = vadd.f32 %v52, %v53
    %v55 = vadd.f32 %v54, 0.0
    %56 = vst [vmem:[#allocation7] sm:$0xff] %v55
    // Predicated region
    $region18: #{tpu_custom_call.1} parent=1 // pred_check
      _
    $region19: #{tpu_custom_call.1} parent=1 // pred_check_branch
      %58 = sbr.rel (0) target = $region21
    $region20: #{tpu_custom_call.1} parent=1 // pred_region
      %s60 = ssub.s32 128, 128
      %61 = vsyncadd [#allocation4], %s60
      %s63 = sshll.u32 [#allocation7], 4
      %s64 = int_to_ptr.vmem [resolvable:$true] %s63
      %66 = dma.vmem_to_hbm [thread:$0]  %s64, 128, %s2, [#allocation4]
    $region21: #{tpu_custom_call.1} parent=1 // pred_fallthru
      _
    // Predicated region
    $region22: #{tpu_custom_call.1} parent=1 // pred_check
      _
    $region23: #{tpu_custom_call.1} parent=1 // pred_check_branch
      %68 = sbr.rel (0) target = $region25
    $region24: #{tpu_custom_call.1} parent=1 // pred_region
      %69 = dma.done [#allocation4], 128
    $region25: #{tpu_custom_call.1} parent=1 // pred_fallthru
      _
    %70 = vsyncpa [#allocation3], 1
    %71 = vsyncpa [#allocation6], 1
    %72 = vsyncpa [#allocation4], 1

</llo_original>
